<compile_context>
chip_gen: v6e
topology: v6e:2x2x1
jax: 0.10.0
libtpu: 0.0.40
codegen_flags: <defaults>
</compile_context>

<pallas_src>
import jax
import jax.numpy as jnp
from jax.experimental import pallas as pl
from jax.experimental.pallas import tpu as pltpu


def _cdiv(a, b):
    return -(-a // b)


def _choose_lane_fold(w):
    """Returns (num_groups, w_pad).

    `num_groups` original planes are folded side by side along the lane axis,
    each zero-padded to `w_pad` columns, so num_groups * w_pad is a multiple
    of 128 (full lane occupancy, lowerable lane rolls).
    """
    if w % 128 == 0:
        return 1, w
    if w < 128:
        w_pad = 1
        while w_pad < w:
            w_pad *= 2                      # next power of two >= w (divides 128)
        return 128 // w_pad, w_pad
    return 1, _cdiv(w, 128) * 128           # large W: just pad lanes up to 128k


def _vmem_limit_bytes():
    """Generation-aware scoped-VMEM limit with ~25% headroom.

    v7x has only 64 MiB VMEM per TensorCore vs 128 MiB on v5e/v6e; fall back
    to the conservative (v7x-sized) assumption if the query fails.
    """
    cap = None
    try:
        cap = getattr(pltpu.get_tpu_info(), "vmem_capacity_bytes", None)
    except Exception:
        cap = None
    if not cap:
        cap = 64 * 1024 * 1024
    return int(min(cap * 3 // 4, 96 * 1024 * 1024))


def _make_tv_kernel(h, w, w_pad, num_groups, use_roll):
    """Builds the per-block TV kernel.

    Input block: (planes_per_block, h, w_eff) with w_eff = num_groups * w_pad;
    each lane-group of width w_pad holds one original (h, w) plane, columns
    [w, w_pad) are zero padding.
    """
    single_group = num_groups == 1
    exact_w = single_group and (w_pad == w)

    def kernel(x_ref, out_ref, acc_h_ref, acc_w_ref):
        step = pl.program_id(1)

        @pl.when(step == 0)
        def _init():
            acc_h_ref[...] = jnp.zeros_like(acc_h_ref)
            acc_w_ref[...] = jnp.zeros_like(acc_w_ref)

        x = x_ref[...]                       # native dtype (bf16 stays bf16)
        w_eff = x.shape[2]

        if use_roll:
            # result[i] = x[i+1] - x[i] (with wrap); diffs in native dtype,
            # square/accumulate in f32.  Wrap row/col + pad cols masked below.
            dh = (pltpu.roll(x, shift=h - 1, axis=1) - x).astype(jnp.float32)
            dw = (pltpu.roll(x, shift=w_eff - 1, axis=2) - x).astype(jnp.float32)

            row = jax.lax.broadcasted_iota(jnp.int32, (h, w_eff), 0)
            col = jax.lax.broadcasted_iota(jnp.int32, (h, w_eff), 1)
            h_mask = (row < h - 1).astype(jnp.float32)
            if single_group:
                w_valid = col < (w - 1)
            else:
                w_valid = (col % w_pad) < (w - 1)   # w_pad is a power of two
            w_mask = w_valid.astype(jnp.float32)

            # Reduce over the plane axis only (plain vreg adds, no XLU); fuse
            # the wrap/pad mask into the per-step contribution so the masked
            # accumulator entries stay exactly zero every step.
            acc_h_ref[...] += jnp.sum(dh * dh, axis=0) * h_mask
            acc_w_ref[...] += jnp.sum(dw * dw, axis=0) * w_mask
        else:
            # Slice fallback (materializes shifted copies) -- only used if the
            # roll variant fails to lower on this generation / dtype.
            dh = (x[:, 1:, :] - x[:, : h - 1, :]).astype(jnp.float32)
            dw = (x[:, :, 1:] - x[:, :, : w_eff - 1]).astype(jnp.float32)
            acc_h_ref[: h - 1, :] += jnp.sum(dh * dh, axis=0)
            dw_sq = jnp.sum(dw * dw, axis=0)
            if not exact_w:
                col = jax.lax.broadcasted_iota(jnp.int32, (h, w_eff - 1), 1)
                if single_group:
                    w_valid = col < (w - 1)
                else:
                    w_valid = (col % w_pad) < (w - 1)
                dw_sq = dw_sq * w_valid.astype(jnp.float32)
            acc_w_ref[:, : w_eff - 1] += dw_sq

        @pl.when(step == pl.num_programs(1) - 1)
        def _finalize():
            # Single full cross-lane/sublane reduction per split, done once.
            out_ref[0, 0] = jnp.sum(acc_h_ref[...])
            out_ref[0, 1] = jnp.sum(acc_w_ref[...])

    return kernel


def tv_loss(x, tv_loss_weight=1.0):
    """Pallas TPU implementation of TVLoss.forward (x is NCHW)."""
    n, c, h, w = x.shape
    if h < 2 or w < 2:
        raise ValueError("TVLoss requires H >= 2 and W >= 2.")

    # PyTorch-style normalization (excludes the batch dim, matching the
    # original module's _tensor_size quirk).
    count_h = c * (h - 1) * w
    count_w = c * h * (w - 1)
    nc = n * c

    num_groups, w_pad = _choose_lane_fold(w)
    w_eff = num_groups * w_pad

    # --- block sizing -------------------------------------------------------
    # Real per-step footprint ~= 2x double-buffered native input block
    # + ~2x f32 diff temporaries + small accumulators, so budget the
    # f32-equivalent input block at ~1/6 of the scoped-VMEM limit.
    vmem_limit = _vmem_limit_bytes()
    plane_bytes_f32 = h * w_eff * 4
    block_budget = max(plane_bytes_f32, vmem_limit // 6)

    p_raw = _cdiv(nc, num_groups)                 # folded plane count (ceil)
    ppb = max(1, min(p_raw, block_budget // plane_bytes_f32))
    splits = 2 if p_raw > ppb else 1              # leading axis for megacore
    steps = _cdiv(p_raw, splits * ppb)
    ppb = _cdiv(p_raw, splits * steps)            # shrink block -> minimal zero padding
    p_total = splits * steps * ppb
    nc_total = p_total * num_groups

    # --- wrapper-side layout plumbing ----------------------------------------
    x_flat = x.reshape(nc, h, w)                  # free reshape, native dtype
    if nc_total != nc or w_pad != w:
        # Zero padding contributes exactly 0 to both sums (pad columns are
        # masked in the kernel, zero planes difference to zero).
        x_flat = jnp.pad(x_flat, ((0, nc_total - nc), (0, 0), (0, w_pad - w)))
    if num_groups > 1:
        # Fold `num_groups` planes side by side along the lane axis so the
        # kernel's last dim is a multiple of 128 (full lane occupancy).
        x_flat = (
            x_flat.reshape(p_total, num_groups, h, w_pad)
            .transpose(0, 2, 1, 3)
            .reshape(p_total, h, w_eff)
        )

    def run(use_roll):
        kernel = _make_tv_kernel(h, w, w_pad, num_groups, use_roll)
        return pl.pallas_call(
            kernel,
            out_shape=jax.ShapeDtypeStruct((splits, 2), jnp.float32),
            grid=(splits, steps),
            in_specs=[
                pl.BlockSpec((ppb, h, w_eff), lambda s, i: (s * steps + i, 0, 0)),
            ],
            out_specs=pl.BlockSpec(
                (1, 2), lambda s, i: (s, 0), memory_space=pltpu.SMEM
            ),
            scratch_shapes=[
                pltpu.VMEM((h, w_eff), jnp.float32),   # acc_h (aligned, full shape)
                pltpu.VMEM((h, w_eff), jnp.float32),   # acc_w
            ],
            compiler_params=pltpu.CompilerParams(
                dimension_semantics=("parallel", "arbitrary"),
                vmem_limit_bytes=vmem_limit,
            ),
        )(x_flat)

    try:
        partials = run(use_roll=True)
    except Exception:
        # Lowering fallback: slice-based finite differences (known-good path).
        partials = run(use_roll=False)

    # Tiny scalar combine + normalization outside the kernel (this is also
    # what keeps the per-split partials correct if the leading axis is ever
    # sharded across cores).
    h_tv = jnp.sum(partials[:, 0])
    w_tv = jnp.sum(partials[:, 1])
    return (
        jnp.float32(tv_loss_weight)
        * 2.0
        * (h_tv / jnp.float32(count_h) + w_tv / jnp.float32(count_w))
        / jnp.float32(n)
    )


def tv_loss_reference(x, tv_loss_weight=1.0):
    """Pure-JAX reference mirroring the PyTorch forward."""
    n, c, h, w = x.shape
    count_h = c * (h - 1) * w
    count_w = c * h * (w - 1)
    xf = x.astype(jnp.float32)
    h_tv = jnp.sum((xf[:, :, 1:, :] - xf[:, :, : h - 1, :]) ** 2)
    w_tv = jnp.sum((xf[:, :, :, 1:] - xf[:, :, :, : w - 1]) ** 2)
    return tv_loss_weight * 2 * (h_tv / count_h + w_tv / count_w) / n


if __name__ == "__main__":
    key = jax.random.PRNGKey(0)
    x = jax.random.normal(key, (2, 4, 16, 16), dtype=jnp.float32)

    out = jax.block_until_ready(tv_loss(x, tv_loss_weight=1.0))
    ref = jax.block_until_ready(tv_loss_reference(x, tv_loss_weight=1.0))
    assert jnp.allclose(out, ref, rtol=1e-5, atol=1e-5), (out, ref)

    # bf16 stays bf16 in HBM and through the subtract (f32 square/accumulate),
    # so tolerances are bf16-level.
    x_bf16 = x.astype(jnp.bfloat16)
    out_bf = jax.block_until_ready(tv_loss(x_bf16, tv_loss_weight=1.0))
    ref_bf = jax.block_until_ready(tv_loss_reference(x_bf16, tv_loss_weight=1.0))
    assert jnp.allclose(out_bf, ref_bf, rtol=2e-2, atol=1e-3), (out_bf, ref_bf)

    # Awkward shape: N*C not a multiple of the lane fold, W needs in-group
    # zero padding (exercises the plane-padding / masking paths).
    x_odd = jax.random.normal(jax.random.PRNGKey(1), (2, 3, 16, 20), dtype=jnp.float32)
    out_odd = jax.block_until_ready(tv_loss(x_odd, tv_loss_weight=0.5))
    ref_odd = jax.block_until_ready(tv_loss_reference(x_odd, tv_loss_weight=0.5))
    assert jnp.allclose(out_odd, ref_odd, rtol=1e-5, atol=1e-5), (out_odd, ref_odd)

    print("KERNEL_OK")
</pallas_src>

<mosaic_0001>
module attributes {stable_mosaic.version = 11 : i64} {
  func.func @kernel(%arg0: i32, %arg1: i32, %arg2: memref<1x16x128xf32, #tpu.memory_space<vmem>>, %arg3: memref<1x2xf32, #tpu.memory_space<smem>>, %arg4: memref<16x128xf32, #tpu.memory_space<vmem>>, %arg5: memref<16x128xf32, #tpu.memory_space<vmem>>) attributes {dimension_semantics = [#tpu.dimension_semantics<parallel>, #tpu.dimension_semantics<arbitrary>], iteration_bounds = array<i64: 1, 1>, scalar_prefetch = 0 : i64, scratch_operands = 2 : i64, tpu.core_type = #tpu.core_type<tc>, window_params = [{transform_indices = @transform_0, window_bounds = array<i64: 1, 16, 128>}, {transform_indices = @transform_1, window_bounds = array<i64: 1, 2>}]} {
    %c0_i32 = arith.constant 0 : i32
    %0 = arith.cmpi eq, %arg1, %c0_i32 : i32
    %1 = arith.extui %0 : i1 to i32
    %c0_i32_0 = arith.constant 0 : i32
    %2 = arith.cmpi ne, %1, %c0_i32_0 : i32
    scf.if %2 {
      %cst_20 = arith.constant 0.000000e+00 : f32
      %49 = vector.broadcast %cst_20 : f32 to vector<16x128xf32>
      %c0_21 = arith.constant 0 : index
      %c0_22 = arith.constant 0 : index
      %50 = vector.load %arg4[%c0_21, %c0_22] : memref<16x128xf32, #tpu.memory_space<vmem>>, vector<16x128xf32>
      tpu.vector_store %arg4[%c0_21, %c0_22], %49 {strides = array<i32>} : memref<16x128xf32, #tpu.memory_space<vmem>>, vector<16x128xf32>,
      %cst_23 = arith.constant 0.000000e+00 : f32
      %51 = vector.broadcast %cst_23 : f32 to vector<16x128xf32>
      %c0_24 = arith.constant 0 : index
      %c0_25 = arith.constant 0 : index
      %52 = vector.load %arg5[%c0_24, %c0_25] : memref<16x128xf32, #tpu.memory_space<vmem>>, vector<16x128xf32>
      tpu.vector_store %arg5[%c0_24, %c0_25], %51 {strides = array<i32>} : memref<16x128xf32, #tpu.memory_space<vmem>>, vector<16x128xf32>,
    } else {
    }
    %c0 = arith.constant 0 : index
    %c0_1 = arith.constant 0 : index
    %c0_2 = arith.constant 0 : index
    %3 = vector.load %arg2[%c0, %c0_1, %c0_2] : memref<1x16x128xf32, #tpu.memory_space<vmem>>, vector<1x16x128xf32>
    %c15_i32 = arith.constant 15 : i32
    %4 = tpu.dynamic_rotate %3 by %c15_i32 dim 1 : vector<1x16x128xf32>, i32 -> vector<1x16x128xf32>
    %5 = arith.subf %4, %3 : vector<1x16x128xf32>
    %c127_i32 = arith.constant 127 : i32
    %6 = tpu.dynamic_rotate %3 by %c127_i32 dim 2 : vector<1x16x128xf32>, i32 -> vector<1x16x128xf32>
    %7 = arith.subf %6, %3 : vector<1x16x128xf32>
    %8 = tpu.iota {dimensions = array<i32: 0>} : vector<16x128xi32>
    %9 = tpu.iota {dimensions = array<i32: 1>} : vector<16x128xi32>
    %c15_i32_3 = arith.constant 15 : i32
    %10 = vector.broadcast %c15_i32_3 : i32 to vector<16x128xi32>
    %11 = arith.cmpi slt, %8, %10 : vector<16x128xi32>
    %12 = arith.extui %11 : vector<16x128xi1> to vector<16x128xi32>
    %13 = arith.sitofp %12 : vector<16x128xi32> to vector<16x128xf32>
    %c16_i32 = arith.constant 16 : i32
    %c0_i32_4 = arith.constant 0 : i32
    %14 = arith.cmpi eq, %c16_i32, %c0_i32_4 : i32
    %c1_i32 = arith.constant 1 : i32
    %15 = arith.select %14, %c1_i32, %c16_i32 : i32
    %16 = vector.broadcast %15 : i32 to vector<16x128xi32>
    %17 = arith.remsi %9, %16 : vector<16x128xi32>
    %c0_i32_5 = arith.constant 0 : i32
    %18 = vector.broadcast %c0_i32_5 : i32 to vector<16x128xi32>
    %19 = arith.cmpi ne, %17, %18 : vector<16x128xi32>
    %c0_i32_6 = arith.constant 0 : i32
    %20 = vector.broadcast %c0_i32_6 : i32 to vector<16x128xi32>
    %21 = arith.cmpi slt, %17, %20 : vector<16x128xi32>
    %c0_i32_7 = arith.constant 0 : i32
    %22 = arith.cmpi slt, %15, %c0_i32_7 : i32
    %23 = vector.broadcast %22 : i1 to vector<16x128xi1>
    %24 = vector.broadcast %23 : vector<16x128xi1> to vector<16x128xi1>
    %25 = arith.xori %21, %24 : vector<16x128xi1>
    %26 = arith.andi %25, %19 : vector<16x128xi1>
    %27 = vector.broadcast %15 : i32 to vector<16x128xi32>
    %28 = arith.addi %17, %27 : vector<16x128xi32>
    %29 = arith.select %26, %28, %17 : vector<16x128xi1>, vector<16x128xi32>
    %c15_i32_8 = arith.constant 15 : i32
    %30 = vector.broadcast %c15_i32_8 : i32 to vector<16x128xi32>
    %31 = arith.cmpi slt, %29, %30 : vector<16x128xi32>
    %32 = arith.extui %31 : vector<16x128xi1> to vector<16x128xi32>
    %33 = arith.sitofp %32 : vector<16x128xi32> to vector<16x128xf32>
    %c0_9 = arith.constant 0 : index
    %c0_10 = arith.constant 0 : index
    %34 = vector.load %arg4[%c0_9, %c0_10] : memref<16x128xf32, #tpu.memory_space<vmem>>, vector<16x128xf32>
    %35 = arith.mulf %5, %5 : vector<1x16x128xf32>
    %cst = arith.constant dense<0.000000e+00> : vector<16x128xf32>
    %36 = vector.multi_reduction <add>, %35, %cst [0] : vector<1x16x128xf32> to vector<16x128xf32>
    %37 = arith.mulf %36, %13 : vector<16x128xf32>
    %38 = arith.addf %34, %37 : vector<16x128xf32>
    %c0_11 = arith.constant 0 : index
    %c0_12 = arith.constant 0 : index
    %39 = vector.load %arg4[%c0_11, %c0_12] : memref<16x128xf32, #tpu.memory_space<vmem>>, vector<16x128xf32>
    tpu.vector_store %arg4[%c0_11, %c0_12], %38 {strides = array<i32>} : memref<16x128xf32, #tpu.memory_space<vmem>>, vector<16x128xf32>,
    %c0_13 = arith.constant 0 : index
    %c0_14 = arith.constant 0 : index
    %40 = vector.load %arg5[%c0_13, %c0_14] : memref<16x128xf32, #tpu.memory_space<vmem>>, vector<16x128xf32>
    %41 = arith.mulf %7, %7 : vector<1x16x128xf32>
    %cst_15 = arith.constant dense<0.000000e+00> : vector<16x128xf32>
    %42 = vector.multi_reduction <add>, %41, %cst_15 [0] : vector<1x16x128xf32> to vector<16x128xf32>
    %43 = arith.mulf %42, %33 : vector<16x128xf32>
    %44 = arith.addf %40, %43 : vector<16x128xf32>
    %c0_16 = arith.constant 0 : index
    %c0_17 = arith.constant 0 : index
    %45 = vector.load %arg5[%c0_16, %c0_17] : memref<16x128xf32, #tpu.memory_space<vmem>>, vector<16x128xf32>
    tpu.vector_store %arg5[%c0_16, %c0_17], %44 {strides = array<i32>} : memref<16x128xf32, #tpu.memory_space<vmem>>, vector<16x128xf32>,
    %c0_i32_18 = arith.constant 0 : i32
    %46 = arith.cmpi eq, %arg1, %c0_i32_18 : i32
    %47 = arith.extui %46 : i1 to i32
    %c0_i32_19 = arith.constant 0 : i32
    %48 = arith.cmpi ne, %47, %c0_i32_19 : i32
    scf.if %48 {
      %c0_20 = arith.constant 0 : index
      %c0_21 = arith.constant 0 : index
      %49 = vector.load %arg4[%c0_20, %c0_21] : memref<16x128xf32, #tpu.memory_space<vmem>>, vector<16x128xf32>
      %50 = vector.shape_cast %49 : vector<16x128xf32> to vector<1x16x128xf32>
      %cst_22 = arith.constant dense<0.000000e+00> : vector<1xf32>
      %51 = vector.multi_reduction <add>, %50, %cst_22 [1, 2] : vector<1x16x128xf32> to vector<1xf32>
      %52 = vector.shape_cast %51 : vector<1xf32> to vector<1x1x1xf32>
      %53 = vector.extract %52[0, 0, 0] : f32 from vector<1x1x1xf32>
      %c0_23 = arith.constant 0 : index
      %c0_24 = arith.constant 0 : index
      %54 = memref.load %arg3[%c0_23, %c0_24] : memref<1x2xf32, #tpu.memory_space<smem>>
      memref.store %53, %arg3[%c0_23, %c0_24] : memref<1x2xf32, #tpu.memory_space<smem>>
      %c0_25 = arith.constant 0 : index
      %c0_26 = arith.constant 0 : index
      %55 = vector.load %arg5[%c0_25, %c0_26] : memref<16x128xf32, #tpu.memory_space<vmem>>, vector<16x128xf32>
      %56 = vector.shape_cast %55 : vector<16x128xf32> to vector<1x16x128xf32>
      %cst_27 = arith.constant dense<0.000000e+00> : vector<1xf32>
      %57 = vector.multi_reduction <add>, %56, %cst_27 [1, 2] : vector<1x16x128xf32> to vector<1xf32>
      %58 = vector.shape_cast %57 : vector<1xf32> to vector<1x1x1xf32>
      %59 = vector.extract %58[0, 0, 0] : f32 from vector<1x1x1xf32>
      %c0_28 = arith.constant 0 : index
      %c1 = arith.constant 1 : index
      %60 = memref.load %arg3[%c0_28, %c1] : memref<1x2xf32, #tpu.memory_space<smem>>
      memref.store %59, %arg3[%c0_28, %c1] : memref<1x2xf32, #tpu.memory_space<smem>>
    } else {
    }
    return
  }
  func.func @transform_0(%arg0: i32, %arg1: i32) -> (i32, i32, i32) {
    %c1_i32 = arith.constant 1 : i32
    %0 = arith.muli %arg0, %c1_i32 : i32
    %1 = arith.addi %0, %arg1 : i32
    %c0_i32 = arith.constant 0 : i32
    %c0_i32_0 = arith.constant 0 : i32
    %c0_i32_1 = arith.constant 0 : i32
    return %1, %c0_i32, %c0_i32_0 : i32, i32, i32
  }
  func.func @transform_1(%arg0: i32, %arg1: i32) -> (i32, i32) {
    %c0_i32 = arith.constant 0 : i32
    %c0_i32_0 = arith.constant 0 : i32
    return %arg0, %c0_i32 : i32, i32
  }
}

module attributes {stable_mosaic.version = 11 : i64} {
  func.func @kernel(%arg0: i32, %arg1: i32, %arg2: memref<1x16x128xf32, #tpu.memory_space<vmem>>, %arg3: memref<1x2xf32, #tpu.memory_space<smem>>, %arg4: memref<16x128xf32, #tpu.memory_space<vmem>>, %arg5: memref<16x128xf32, #tpu.memory_space<vmem>>) attributes {dimension_semantics = [#tpu.dimension_semantics<parallel>, #tpu.dimension_semantics<arbitrary>], iteration_bounds = array<i64: 1, 1>, scalar_prefetch = 0 : i64, scratch_operands = 2 : i64, tpu.core_type = #tpu.core_type<tc>, window_params = [{transform_indices = @transform_0, window_bounds = array<i64: 1, 16, 128>}, {transform_indices = @transform_1, window_bounds = array<i64: 1, 2>}]} {
    %c0_i32 = arith.constant 0 : i32
    %0 = arith.cmpi eq, %arg1, %c0_i32 : i32
    %1 = arith.extui %0 : i1 to i32
    %c0_i32_0 = arith.constant 0 : i32
    %2 = arith.cmpi ne, %1, %c0_i32_0 : i32
    scf.if %2 {
      %cst_18 = arith.constant 0.000000e+00 : f32
      %45 = vector.broadcast %cst_18 : f32 to vector<16x128xf32>
      %c0_19 = arith.constant 0 : index
      %c0_20 = arith.constant 0 : index
      %46 = vector.load %arg4[%c0_19, %c0_20] : memref<16x128xf32, #tpu.memory_space<vmem>>, vector<16x128xf32>
      tpu.vector_store %arg4[%c0_19, %c0_20], %45 {strides = array<i32>} : memref<16x128xf32, #tpu.memory_space<vmem>>, vector<16x128xf32>,
      %cst_21 = arith.constant 0.000000e+00 : f32
      %47 = vector.broadcast %cst_21 : f32 to vector<16x128xf32>
      %c0_22 = arith.constant 0 : index
      %c0_23 = arith.constant 0 : index
      %48 = vector.load %arg5[%c0_22, %c0_23] : memref<16x128xf32, #tpu.memory_space<vmem>>, vector<16x128xf32>
      tpu.vector_store %arg5[%c0_22, %c0_23], %47 {strides = array<i32>} : memref<16x128xf32, #tpu.memory_space<vmem>>, vector<16x128xf32>,
    } else {
    }
    %c0 = arith.constant 0 : index
    %c0_1 = arith.constant 0 : index
    %c0_2 = arith.constant 0 : index
    %3 = vector.load %arg2[%c0, %c0_1, %c0_2] : memref<1x16x128xf32, #tpu.memory_space<vmem>>, vector<1x16x128xf32>
    %4 = vector.extract_strided_slice %3 {offsets = [0, 1, 0], sizes = [1, 15, 128], strides = [1, 1, 1]} : vector<1x16x128xf32> to vector<1x15x128xf32>
    %5 = vector.extract_strided_slice %3 {offsets = [0, 0, 0], sizes = [1, 15, 128], strides = [1, 1, 1]} : vector<1x16x128xf32> to vector<1x15x128xf32>
    %6 = arith.subf %4, %5 : vector<1x15x128xf32>
    %7 = vector.extract_strided_slice %3 {offsets = [0, 0, 1], sizes = [1, 16, 127], strides = [1, 1, 1]} : vector<1x16x128xf32> to vector<1x16x127xf32>
    %8 = vector.extract_strided_slice %3 {offsets = [0, 0, 0], sizes = [1, 16, 127], strides = [1, 1, 1]} : vector<1x16x128xf32> to vector<1x16x127xf32>
    %9 = arith.subf %7, %8 : vector<1x16x127xf32>
    %c0_3 = arith.constant 0 : index
    %c0_4 = arith.constant 0 : index
    %10 = vector.load %arg4[%c0_3, %c0_4] : memref<16x128xf32, #tpu.memory_space<vmem>>, vector<15x128xf32>
    %11 = arith.mulf %6, %6 : vector<1x15x128xf32>
    %cst = arith.constant dense<0.000000e+00> : vector<15x128xf32>
    %12 = vector.multi_reduction <add>, %11, %cst [0] : vector<1x15x128xf32> to vector<15x128xf32>
    %13 = arith.addf %10, %12 : vector<15x128xf32>
    %c0_5 = arith.constant 0 : index
    %c0_6 = arith.constant 0 : index
    %14 = vector.load %arg4[%c0_5, %c0_6] : memref<16x128xf32, #tpu.memory_space<vmem>>, vector<15x128xf32>
    tpu.vector_store %arg4[%c0_5, %c0_6], %13 {strides = array<i32>} : memref<16x128xf32, #tpu.memory_space<vmem>>, vector<15x128xf32>,
    %15 = arith.mulf %9, %9 : vector<1x16x127xf32>
    %cst_7 = arith.constant dense<0.000000e+00> : vector<16x127xf32>
    %16 = vector.multi_reduction <add>, %15, %cst_7 [0] : vector<1x16x127xf32> to vector<16x127xf32>
    %17 = tpu.iota {dimensions = array<i32: 1>} : vector<16x127xi32>
    %c16_i32 = arith.constant 16 : i32
    %c0_i32_8 = arith.constant 0 : i32
    %18 = arith.cmpi eq, %c16_i32, %c0_i32_8 : i32
    %c1_i32 = arith.constant 1 : i32
    %19 = arith.select %18, %c1_i32, %c16_i32 : i32
    %20 = vector.broadcast %19 : i32 to vector<16x127xi32>
    %21 = arith.remsi %17, %20 : vector<16x127xi32>
    %c0_i32_9 = arith.constant 0 : i32
    %22 = vector.broadcast %c0_i32_9 : i32 to vector<16x127xi32>
    %23 = arith.cmpi ne, %21, %22 : vector<16x127xi32>
    %c0_i32_10 = arith.constant 0 : i32
    %24 = vector.broadcast %c0_i32_10 : i32 to vector<16x127xi32>
    %25 = arith.cmpi slt, %21, %24 : vector<16x127xi32>
    %c0_i32_11 = arith.constant 0 : i32
    %26 = arith.cmpi slt, %19, %c0_i32_11 : i32
    %27 = vector.broadcast %26 : i1 to vector<16x127xi1>
    %28 = vector.broadcast %27 : vector<16x127xi1> to vector<16x127xi1>
    %29 = arith.xori %25, %28 : vector<16x127xi1>
    %30 = arith.andi %29, %23 : vector<16x127xi1>
    %31 = vector.broadcast %19 : i32 to vector<16x127xi32>
    %32 = arith.addi %21, %31 : vector<16x127xi32>
    %33 = arith.select %30, %32, %21 : vector<16x127xi1>, vector<16x127xi32>
    %c15_i32 = arith.constant 15 : i32
    %34 = vector.broadcast %c15_i32 : i32 to vector<16x127xi32>
    %35 = arith.cmpi slt, %33, %34 : vector<16x127xi32>
    %36 = arith.extui %35 : vector<16x127xi1> to vector<16x127xi32>
    %37 = arith.sitofp %36 : vector<16x127xi32> to vector<16x127xf32>
    %38 = arith.mulf %16, %37 : vector<16x127xf32>
    %c0_12 = arith.constant 0 : index
    %c0_13 = arith.constant 0 : index
    %39 = vector.load %arg5[%c0_12, %c0_13] : memref<16x128xf32, #tpu.memory_space<vmem>>, vector<16x127xf32>
    %40 = arith.addf %39, %38 : vector<16x127xf32>
    %c0_14 = arith.constant 0 : index
    %c0_15 = arith.constant 0 : index
    %41 = vector.load %arg5[%c0_14, %c0_15] : memref<16x128xf32, #tpu.memory_space<vmem>>, vector<16x127xf32>
    tpu.vector_store %arg5[%c0_14, %c0_15], %40 {strides = array<i32>} : memref<16x128xf32, #tpu.memory_space<vmem>>, vector<16x127xf32>,
    %c0_i32_16 = arith.constant 0 : i32
    %42 = arith.cmpi eq, %arg1, %c0_i32_16 : i32
    %43 = arith.extui %42 : i1 to i32
    %c0_i32_17 = arith.constant 0 : i32
    %44 = arith.cmpi ne, %43, %c0_i32_17 : i32
    scf.if %44 {
      %c0_18 = arith.constant 0 : index
      %c0_19 = arith.constant 0 : index
      %45 = vector.load %arg4[%c0_18, %c0_19] : memref<16x128xf32, #tpu.memory_space<vmem>>, vector<16x128xf32>
      %46 = vector.shape_cast %45 : vector<16x128xf32> to vector<1x16x128xf32>
      %cst_20 = arith.constant dense<0.000000e+00> : vector<1xf32>
      %47 = vector.multi_reduction <add>, %46, %cst_20 [1, 2] : vector<1x16x128xf32> to vector<1xf32>
      %48 = vector.shape_cast %47 : vector<1xf32> to vector<1x1x1xf32>
      %49 = vector.extract %48[0, 0, 0] : f32 from vector<1x1x1xf32>
      %c0_21 = arith.constant 0 : index
      %c0_22 = arith.constant 0 : index
      %50 = memref.load %arg3[%c0_21, %c0_22] : memref<1x2xf32, #tpu.memory_space<smem>>
      memref.store %49, %arg3[%c0_21, %c0_22] : memref<1x2xf32, #tpu.memory_space<smem>>
      %c0_23 = arith.constant 0 : index
      %c0_24 = arith.constant 0 : index
      %51 = vector.load %arg5[%c0_23, %c0_24] : memref<16x128xf32, #tpu.memory_space<vmem>>, vector<16x128xf32>
      %52 = vector.shape_cast %51 : vector<16x128xf32> to vector<1x16x128xf32>
      %cst_25 = arith.constant dense<0.000000e+00> : vector<1xf32>
      %53 = vector.multi_reduction <add>, %52, %cst_25 [1, 2] : vector<1x16x128xf32> to vector<1xf32>
      %54 = vector.shape_cast %53 : vector<1xf32> to vector<1x1x1xf32>
      %55 = vector.extract %54[0, 0, 0] : f32 from vector<1x1x1xf32>
      %c0_26 = arith.constant 0 : index
      %c1 = arith.constant 1 : index
      %56 = memref.load %arg3[%c0_26, %c1] : memref<1x2xf32, #tpu.memory_space<smem>>
      memref.store %55, %arg3[%c0_26, %c1] : memref<1x2xf32, #tpu.memory_space<smem>>
    } else {
    }
    return
  }
  func.func @transform_0(%arg0: i32, %arg1: i32) -> (i32, i32, i32) {
    %c1_i32 = arith.constant 1 : i32
    %0 = arith.muli %arg0, %c1_i32 : i32
    %1 = arith.addi %0, %arg1 : i32
    %c0_i32 = arith.constant 0 : i32
    %c0_i32_0 = arith.constant 0 : i32
    %c0_i32_1 = arith.constant 0 : i32
    return %1, %c0_i32, %c0_i32_0 : i32, i32, i32
  }
  func.func @transform_1(%arg0: i32, %arg1: i32) -> (i32, i32) {
    %c0_i32 = arith.constant 0 : i32
    %c0_i32_0 = arith.constant 0 : i32
    return %arg0, %c0_i32 : i32, i32
  }
}

</mosaic_0001>

<llo_original>
// kernel: tpu_custom_call.1
$region0: #{tpu_custom_call.1}
  #allocation0 [shape = 'u32[]', space=smem, size = 0x4, offset = 0x4, fixed_abs, tag = 'smem constant byte address 0x4 - core index']
  #allocation1 [shape = 'u32[144,128]{1,0:T(1,128)}', space=vmem, size = 0x12000, scoped, tag = 'internal scratch']
  #allocation2 [shape = 'f32[16,128]{1,0:T(8,128)}', space=vmem, size = 0x2000, scoped, tag = 'scratch operand']
  #allocation3 [shape = 'f32[16,128]{1,0:T(8,128)}', space=vmem, size = 0x2000, scoped, tag = 'scratch operand']
  %s0 = inlined_call_operand.hbm [shape: f32[1,16,128], index: 0, kind: input, shape index: {}]
  %s1 = inlined_call_operand.hbm [shape: f32[1,2], index: 1, kind: output, shape index: {}]
  %s2 = sld [smem:[#allocation0]]
  $region26: #{tpu_custom_call.1} parent=0
    _
  %s4 = ssub.s32 1, %s2
  %s5 = scalar_select 0, %s4, %s2
  $region1: #{tpu_custom_call.1} parent=0
    #allocation4 [shape = 'u8[8192]{0}', space=vmem, size = 0x2000, scoped, tag = 'input window, operand 0, single buffered']
    #allocation5 [shape = 's32[1]{0}', space=sflag, size = 0x4, scoped, tag = 'scoped memory for tpu_custom_call.1']
    #allocation6 [shape = 's32[1]{0}', space=sflag, size = 0x4, scoped, tag = 'scoped memory for tpu_custom_call.1']
    #allocation7 [shape = 'u8[512]{0}', space=smem, size = 0x200, scoped, tag = 'output window, operand 0, single buffered']
    %6 = vsyncpa [#allocation5], 0
    %7 = vsyncpa [#allocation6], 0
    // Predicated region
    $region2: #{tpu_custom_call.1} parent=1 // pred_check
      _
    $region3: #{tpu_custom_call.1} parent=1 // pred_check_branch
      %9 = sbr.rel (0) target = $region5
    $region4: #{tpu_custom_call.1} parent=1 // pred_region
      %s10 = sadd.s32 0, 0
      %s12 = ssub.s32 256, 256
      %13 = vsyncadd [#allocation5], %s12
      %s14 = smul.addr %s10, 2
      %s15 = smul.addr %s14, 128
      %s16 = scalar_lea.hbm %s0, %s15
      %s17 = sshll.u32 [#allocation4], 4
      %s18 = int_to_ptr.vmem [resolvable:$true] %s17
      %23 = dma.hbm_to_vmem [thread:$0]  %s16, 256, %s18, [#allocation5], 128, 128, 8
    $region5: #{tpu_custom_call.1} parent=1 // pred_fallthru
      _
    // Predicated region
    $region6: #{tpu_custom_call.1} parent=1 // pred_check
      _
    $region7: #{tpu_custom_call.1} parent=1 // pred_check_branch
      %25 = sbr.rel (0) target = $region9
    $region8: #{tpu_custom_call.1} parent=1 // pred_region
      %26 = dma.done [#allocation5], 256
    $region9: #{tpu_custom_call.1} parent=1 // pred_fallthru
      _
    %s27 = sadd.s32 0, 0
    %p28 = scmp.eq.s32.totalorder 0, 0
    // Predicated region
    $region10: #{tpu_custom_call.1} parent=1 // pred_check
      %p29 = pneg %p28
    $region11: #{tpu_custom_call.1} parent=1 // pred_check_branch
      %31 = sbr.rel (%p29) target = $region13
    $region12: #{tpu_custom_call.1} parent=1 // pred_region
      %32 = vst [vmem:[#allocation2] sm:$0xff] 0.0
      %33 = vst [vmem:[#allocation2 + $0x8] sm:$0xff] 0.0
      %34 = vst [vmem:[#allocation3] sm:$0xff] 0.0
      %35 = vst [vmem:[#allocation3 + $0x8] sm:$0xff] 0.0
    $region13: #{tpu_custom_call.1} parent=1 // pred_fallthru
      _
    %v36 = vld [vmem:[#allocation4] sm:$0xff]
    %v37 = vld [vmem:[#allocation4 + $0x8] sm:$0xff]
    %v38 = vrot.slane %v36, 1
    %v39 = vrot.slane %v37, 1
    %v40 = vlaneseq
    %v41 = vshrl.u32 %v40, 7
    %vm42 = vcmp.lt.s32.totalorder %v41, 7
    %v43 = vsel %vm42, %v38, %v39
    %v44 = vsel %vm42, %v39, %v38
    %v45 = vsub.f32 %v43, %v36
    %v46 = vsub.f32 %v44, %v37
    %47 = vrot.lane.b32.xlu0 %v36, 127
    %v48 = vpop.permute.xlu0 %47
    %49 = vrot.lane.b32.xlu0 %v37, 127
    %v50 = vpop.permute.xlu0 %49
    %v51 = vsub.f32 %v48, %v36
    %v52 = vsub.f32 %v50, %v37
    %v53 = vadd.s32 %v41, 8
    %v54 = vlaneseq
    %v55 = vand.u32 %v54, 127
    %vm56 = vcmp.lt.s32.totalorder %v41, 15
    %vm57 = vcmp.lt.s32.totalorder %v53, 15
    %v58 = vsel %vm56, 1, 0
    %v59 = vsel %vm57, 1, 0
    %v60 = vcvt.s32.f32 %v58
    %v61 = vcvt.s32.f32 %v59
    %vm62 = vcmp.lt.s32.totalorder %v55, 0
    %v63 = vsub.s32 0, %v55
    %v64 = vsel %vm62, %v63, %v55
    %v65 = vshrl.u32 %v64, 4
    %v66 = vand.u32 %v64, 15
    %v67 = vsub.s32 0, %v66
    %v68 = vsel %vm62, %v67, %v66
    %vm69 = vcmp.ne.s32.totalorder %v68, 0
    %vm70 = vcmp.lt.s32.totalorder %v68, 0
    %vm71 = vmand %vm70, %vm69
    %v72 = vadd.s32 %v68, 16
    %v73 = vsel %vm71, %v72, %v68
    %vm74 = vcmp.lt.s32.totalorder %v73, 15
    %v75 = vsel %vm74, 1, 0
    %v76 = vcvt.s32.f32 %v75
    %v77 = vld [vmem:[#allocation2] sm:$0xff]
    %v78 = vld [vmem:[#allocation2 + $0x8] sm:$0xff]
    %v79 = vmul.f32 %v45, %v45
    %v80 = vmul.f32 %v46, %v46
    %v81 = vadd.f32 %v79, 0.0
    %v82 = vadd.f32 %v80, 0.0
    %v83 = vmul.f32 %v81, %v60
    %v84 = vmul.f32 %v82, %v61
    %v85 = vadd.f32 %v77, %v83
    %v86 = vadd.f32 %v78, %v84
    %87 = vst [vmem:[#allocation2] sm:$0xff] %v85
    %88 = vst [vmem:[#allocation2 + $0x8] sm:$0xff] %v86
    %v89 = vld [vmem:[#allocation3] sm:$0xff]
    %v90 = vld [vmem:[#allocation3 + $0x8] sm:$0xff]
    %v91 = vmul.f32 %v51, %v51
    %v92 = vmul.f32 %v52, %v52
    %v93 = vadd.f32 %v91, 0.0
    %v94 = vadd.f32 %v92, 0.0
    %v95 = vmul.f32 %v93, %v76
    %v96 = vmul.f32 %v94, %v76
    %v97 = vadd.f32 %v89, %v95
    %v98 = vadd.f32 %v90, %v96
    %99 = vst [vmem:[#allocation3] sm:$0xff] %v97
    %100 = vst [vmem:[#allocation3 + $0x8] sm:$0xff] %v98
    // Predicated region
    $region14: #{tpu_custom_call.1} parent=1 // pred_check
      %p101 = pneg %p28
    $region15: #{tpu_custom_call.1} parent=1 // pred_check_branch
      %103 = sbr.rel (%p101) target = $region17
    $region16: #{tpu_custom_call.1} parent=1 // pred_region
      %v104 = vld [vmem:[#allocation2] sm:$0xff]
      %v105 = vld [vmem:[#allocation2 + $0x8] sm:$0xff]
      %v106 = vadd.f32 %v104, %v105
      %107 = vadd.xlane.f32.xlu0 %v106
      %v108 = vpop.xlane.xlu0 %107
      %v109 = vrot.slane %v108, 4
      %v110 = vadd.f32 %v108, %v109
      %v111 = vrot.slane %v110, 2
      %v112 = vadd.f32 %v110, %v111
      %v113 = vrot.slane %v112, 1
      %v114 = vadd.f32 %v112, %v113
      %s115 = vtos %v114
      %s116 = scalar_lea.smem [#allocation7], 0
      %117 = sst [smem:[%s116]] %s115
      %v118 = vld [vmem:[#allocation3] sm:$0xff]
      %v119 = vld [vmem:[#allocation3 + $0x8] sm:$0xff]
      %v120 = vadd.f32 %v118, %v119
      %121 = vadd.xlane.f32.xlu0 %v120
      %v122 = vpop.xlane.xlu0 %121
      %v123 = vrot.slane %v122, 4
      %v124 = vadd.f32 %v122, %v123
      %v125 = vrot.slane %v124, 2
      %v126 = vadd.f32 %v124, %v125
      %v127 = vrot.slane %v126, 1
      %v128 = vadd.f32 %v126, %v127
      %s129 = vtos %v128
      %s130 = scalar_lea.smem [#allocation7], 1
      %131 = sst [smem:[%s130]] %s129
    $region17: #{tpu_custom_call.1} parent=1 // pred_fallthru
      _
    // Predicated region
    $region18: #{tpu_custom_call.1} parent=1 // pred_check
      _
    $region19: #{tpu_custom_call.1} parent=1 // pred_check_branch
      %133 = sbr.rel (0) target = $region21
    $region20: #{tpu_custom_call.1} parent=1 // pred_region
      %s135 = ssub.s32 16, 16
      %136 = vsyncadd [#allocation6], %s135
      %139 = dma.smem_to_hbm [#allocation7], 16, %s1, [#allocation6]
    $region21: #{tpu_custom_call.1} parent=1 // pred_fallthru
      _
    // Predicated region
    $region22: #{tpu_custom_call.1} parent=1 // pred_check
      _
    $region23: #{tpu_custom_call.1} parent=1 // pred_check_branch
      %141 = sbr.rel (0) target = $region25
    $region24: #{tpu_custom_call.1} parent=1 // pred_region
      %142 = dma.done [#allocation6], 16
    $region25: #{tpu_custom_call.1} parent=1 // pred_fallthru
      _
    %143 = sfence
    %144 = vsyncpa [#allocation5], 1
    %145 = vsyncpa [#allocation6], 1

// kernel: tpu_custom_call.1
$region0: #{tpu_custom_call.1}
  #allocation0 [shape = 'u32[]', space=smem, size = 0x4, offset = 0x4, fixed_abs, tag = 'smem constant byte address 0x4 - core index']
  #allocation1 [shape = 'u32[144,128]{1,0:T(1,128)}', space=vmem, size = 0x12000, scoped, tag = 'internal scratch']
  #allocation2 [shape = 'f32[16,128]{1,0:T(8,128)}', space=vmem, size = 0x2000, scoped, tag = 'scratch operand']
  #allocation3 [shape = 'f32[16,128]{1,0:T(8,128)}', space=vmem, size = 0x2000, scoped, tag = 'scratch operand']
  %s0 = inlined_call_operand.hbm [shape: f32[1,16,128], index: 0, kind: input, shape index: {}]
  %s1 = inlined_call_operand.hbm [shape: f32[1,2], index: 1, kind: output, shape index: {}]
  %s2 = sld [smem:[#allocation0]]
  $region26: #{tpu_custom_call.1} parent=0
    _
  %s4 = ssub.s32 1, %s2
  %s5 = scalar_select 0, %s4, %s2
  $region1: #{tpu_custom_call.1} parent=0
    #allocation4 [shape = 'u8[8192]{0}', space=vmem, size = 0x2000, scoped, tag = 'input window, operand 0, single buffered']
    #allocation5 [shape = 's32[1]{0}', space=sflag, size = 0x4, scoped, tag = 'scoped memory for tpu_custom_call.1']
    #allocation6 [shape = 's32[1]{0}', space=sflag, size = 0x4, scoped, tag = 'scoped memory for tpu_custom_call.1']
    #allocation7 [shape = 'u8[512]{0}', space=smem, size = 0x200, scoped, tag = 'output window, operand 0, single buffered']
    %6 = vsyncpa [#allocation5], 0
    %7 = vsyncpa [#allocation6], 0
    // Predicated region
    $region2: #{tpu_custom_call.1} parent=1 // pred_check
      _
    $region3: #{tpu_custom_call.1} parent=1 // pred_check_branch
      %9 = sbr.rel (0) target = $region5
    $region4: #{tpu_custom_call.1} parent=1 // pred_region
      %s10 = sadd.s32 0, 0
      %s12 = ssub.s32 256, 256
      %13 = vsyncadd [#allocation5], %s12
      %s14 = smul.addr %s10, 2
      %s15 = smul.addr %s14, 128
      %s16 = scalar_lea.hbm %s0, %s15
      %s17 = sshll.u32 [#allocation4], 4
      %s18 = int_to_ptr.vmem [resolvable:$true] %s17
      %23 = dma.hbm_to_vmem [thread:$0]  %s16, 256, %s18, [#allocation5], 128, 128, 8
    $region5: #{tpu_custom_call.1} parent=1 // pred_fallthru
      _
    // Predicated region
    $region6: #{tpu_custom_call.1} parent=1 // pred_check
      _
    $region7: #{tpu_custom_call.1} parent=1 // pred_check_branch
      %25 = sbr.rel (0) target = $region9
    $region8: #{tpu_custom_call.1} parent=1 // pred_region
      %26 = dma.done [#allocation5], 256
    $region9: #{tpu_custom_call.1} parent=1 // pred_fallthru
      _
    %s27 = sadd.s32 0, 0
    %p28 = scmp.eq.s32.totalorder 0, 0
    // Predicated region
    $region10: #{tpu_custom_call.1} parent=1 // pred_check
      %p29 = pneg %p28
    $region11: #{tpu_custom_call.1} parent=1 // pred_check_branch
      %31 = sbr.rel (%p29) target = $region13
    $region12: #{tpu_custom_call.1} parent=1 // pred_region
      %32 = vst [vmem:[#allocation2] sm:$0xff] 0.0
      %33 = vst [vmem:[#allocation2 + $0x8] sm:$0xff] 0.0
      %34 = vst [vmem:[#allocation3] sm:$0xff] 0.0
      %35 = vst [vmem:[#allocation3 + $0x8] sm:$0xff] 0.0
    $region13: #{tpu_custom_call.1} parent=1 // pred_fallthru
      _
    %v36 = vld [vmem:[#allocation4] sm:$0xff]
    %v37 = vld [vmem:[#allocation4 + $0x8] sm:$0xff]
    %vm40 = vcmask 1040384
    %v41 = vrot.slane %v36, 7
    %v42 = vrot.slane %v37, 7
    %v43 = vsel %vm40, %v41, %v42
    %v46 = vsub.f32 %v36, %v41
    %v47 = vsub.f32 %v37, %v43
    %48 = vrot.lane.b32.xlu0 %v36, 1
    %v49 = vpop.permute.xlu0 %48
    %50 = vrot.lane.b32.xlu0 %v37, 1
    %v51 = vpop.permute.xlu0 %50
    %v54 = vsub.f32 %v36, %v49
    %v55 = vsub.f32 %v37, %v51
    %v56 = vld [vmem:[#allocation2] sm:$0xff]
    %v57 = vld [vmem:[#allocation2 + $0x8] sm:$0x7f]
    %v58 = vmul.f32 %v46, %v46
    %v59 = vmul.f32 %v47, %v47
    %v60 = vadd.f32 %v58, 0.0
    %v61 = vadd.f32 %v59, 0.0
    %vm64 = vcmask 1046528
    %v65 = vrot.slane %v60, 1
    %v66 = vrot.slane %v61, 1
    %v67 = vsel %vm64, %v65, %v66
    %v70 = vadd.f32 %v56, %v67
    %v71 = vadd.f32 %v57, %v66
    %72 = vst [vmem:[#allocation2] sm:$0xff] %v70
    %73 = vst [vmem:[#allocation2 + $0x8] sm:$0x7f] %v71
    %v74 = vmul.f32 %v54, %v54
    %v75 = vmul.f32 %v55, %v55
    %v76 = vadd.f32 %v74, 0.0
    %v77 = vadd.f32 %v75, 0.0
    %v78 = vlaneseq
    %v79 = vand.u32 %v78, 127
    %vm80 = vcmp.lt.s32.totalorder %v79, 0
    %v81 = vsub.s32 0, %v79
    %v82 = vsel %vm80, %v81, %v79
    %v83 = vshrl.u32 %v82, 4
    %v84 = vand.u32 %v82, 15
    %v85 = vsub.s32 0, %v84
    %v86 = vsel %vm80, %v85, %v84
    %vm87 = vcmp.ne.s32.totalorder %v86, 0
    %vm88 = vcmp.lt.s32.totalorder %v86, 0
    %vm89 = vmand %vm88, %vm87
    %v90 = vadd.s32 %v86, 16
    %v91 = vsel %vm89, %v90, %v86
    %vm92 = vcmp.lt.s32.totalorder %v91, 15
    %v93 = vsel %vm92, 1, 0
    %v94 = vcvt.s32.f32 %v93
    %96 = vrot.lane.b32.xlu0 %v94, 1
    %v97 = vpop.permute.xlu0 %96
    %v99 = vmul.f32 %v76, %v97
    %v100 = vmul.f32 %v77, %v97
    %v101 = vld [vmem:[#allocation3] sm:$0xff]
    %v102 = vld [vmem:[#allocation3 + $0x8] sm:$0xff]
    %105 = vrot.lane.b32.xlu0 %v99, 127
    %v106 = vpop.permute.xlu0 %105
    %107 = vrot.lane.b32.xlu0 %v100, 127
    %v108 = vpop.permute.xlu0 %107
    %v111 = vadd.f32 %v101, %v106
    %v112 = vadd.f32 %v102, %v108
    %vm113 = vcmask 1039360
    %114 = vst.msk [vmem:[#allocation3] sm:$0xff] %vm113, %v111
    %115 = vst.msk [vmem:[#allocation3 + $0x8] sm:$0xff] %vm113, %v112
    // Predicated region
    $region14: #{tpu_custom_call.1} parent=1 // pred_check
      %p116 = pneg %p28
    $region15: #{tpu_custom_call.1} parent=1 // pred_check_branch
      %118 = sbr.rel (%p116) target = $region17
    $region16: #{tpu_custom_call.1} parent=1 // pred_region
      %v119 = vld [vmem:[#allocation2] sm:$0xff]
      %v120 = vld [vmem:[#allocation2 + $0x8] sm:$0xff]
      %v121 = vadd.f32 %v119, %v120
      %122 = vadd.xlane.f32.xlu0 %v121
      %v123 = vpop.xlane.xlu0 %122
      %v124 = vrot.slane %v123, 4
      %v125 = vadd.f32 %v123, %v124
      %v126 = vrot.slane %v125, 2
      %v127 = vadd.f32 %v125, %v126
      %v128 = vrot.slane %v127, 1
      %v129 = vadd.f32 %v127, %v128
      %s130 = vtos %v129
      %s131 = scalar_lea.smem [#allocation7], 0
      %132 = sst [smem:[%s131]] %s130
      %v133 = vld [vmem:[#allocation3] sm:$0xff]
      %v134 = vld [vmem:[#allocation3 + $0x8] sm:$0xff]
      %v135 = vadd.f32 %v133, %v134
      %136 = vadd.xlane.f32.xlu0 %v135
      %v137 = vpop.xlane.xlu0 %136
      %v138 = vrot.slane %v137, 4
      %v139 = vadd.f32 %v137, %v138
      %v140 = vrot.slane %v139, 2
      %v141 = vadd.f32 %v139, %v140
      %v142 = vrot.slane %v141, 1
      %v143 = vadd.f32 %v141, %v142
      %s144 = vtos %v143
      %s145 = scalar_lea.smem [#allocation7], 1
      %146 = sst [smem:[%s145]] %s144
    $region17: #{tpu_custom_call.1} parent=1 // pred_fallthru
      _
    // Predicated region
    $region18: #{tpu_custom_call.1} parent=1 // pred_check
      _
    $region19: #{tpu_custom_call.1} parent=1 // pred_check_branch
      %148 = sbr.rel (0) target = $region21
    $region20: #{tpu_custom_call.1} parent=1 // pred_region
      %s150 = ssub.s32 16, 16
      %151 = vsyncadd [#allocation6], %s150
      %154 = dma.smem_to_hbm [#allocation7], 16, %s1, [#allocation6]
    $region21: #{tpu_custom_call.1} parent=1 // pred_fallthru
      _
    // Predicated region
    $region22: #{tpu_custom_call.1} parent=1 // pred_check
      _
    $region23: #{tpu_custom_call.1} parent=1 // pred_check_branch
      %156 = sbr.rel (0) target = $region25
    $region24: #{tpu_custom_call.1} parent=1 // pred_region
      %157 = dma.done [#allocation6], 16
    $region25: #{tpu_custom_call.1} parent=1 // pred_fallthru
      _
    %158 = sfence
    %159 = vsyncpa [#allocation5], 1
    %160 = vsyncpa [#allocation6], 1

</llo_original>
